<compile_context>
chip_gen: v7x
topology: tpu7x:2x2x1
jax: 0.10.0
libtpu: 0.0.40
codegen_flags: <defaults>
</compile_context>

<pallas_src>
import functools
import math

import jax
import jax.numpy as jnp
import numpy as np
from jax.experimental import pallas as pl
from jax.experimental.pallas import tpu as pltpu

# 32 MiB scoped VMEM: raises v5e's 16 MiB default, matches the v6e/v7x default
# (v7x physical VMEM is only 64 MiB, so do not request more than this).
_VMEM_LIMIT_BYTES = 32 * 1024 * 1024
# Per-block input budget (double-buffered by the pipeline -> ~2x this resident).
_BLOCK_BUDGET_BYTES = 4 * 1024 * 1024


# ---------------------------------------------------------------------------
# Pooling matrix (cached; depends only on W, factor, dtype)
# ---------------------------------------------------------------------------
@functools.lru_cache(maxsize=None)
def _pool_matrix(in_size, factor, dtype_name):
    # pw[w, wo] = 1/factor if w belongs to output column wo, else 0.
    out_size = in_size // factor
    cols = np.arange(in_size) // factor
    m = (cols[:, None] == np.arange(out_size)[None, :]).astype(np.float32) / factor
    # TODO(synk): for very large W (>= ~2048) this O(W^2/f) matrix gets VMEM-heavy; switch to a
    # tiled-contraction or pure-VPU pooling path there.
    return jnp.asarray(m, dtype=jnp.dtype(dtype_name))


# ---------------------------------------------------------------------------
# Tile-size choosers
# ---------------------------------------------------------------------------
def _choose_tile_h(C, H, W, f, itemsize, budget=_BLOCK_BUDGET_BYTES):
    """Largest TH dividing H s.t. block fits budget, TH % lcm(f,8) == 0 and
    (TH//f)*(W//f) % 128 == 0 (lane-dense, unmasked output stores)."""
    if C * H * W * itemsize <= budget:
        return H
    Wo = W // f
    step = f * 8 // math.gcd(f, 8)  # lcm(f, 8)
    best = None
    th = step
    while th < H:
        if (H % th == 0
                and ((th // f) * Wo) % 128 == 0
                and C * th * W * itemsize <= budget):
            best = th
        th += step
    # Fallback: full H (rely on the raised vmem limit for odd shapes).
    return best if best is not None else H


def _choose_tile_s(C, Cout, S, itemsize, budget=_BLOCK_BUDGET_BYTES):
    """Largest TS dividing S with TS % 128 == 0 that fits the budget (for the pure conv path)."""
    if max(C, Cout) * S * itemsize <= budget:
        return S
    best = None
    ts = 128
    while ts < S:
        if S % ts == 0 and max(C, Cout) * ts * itemsize <= budget:
            best = ts
        ts += 128
    return best if best is not None else S


# ---------------------------------------------------------------------------
# Kernels
# ---------------------------------------------------------------------------
def _make_pool_kernel(C, TH, W, f, remap):
    """Fused 2^n x 2^n average pool (+ optional 1x1 conv) on a (C, TH, W) slab."""
    THo, Wo = TH // f, W // f
    inv_f = 1.0 / f

    def _pool(x3, pw):
        # x3: (C, TH, W), pw: (W, Wo). Returns (C, THo*Wo) float32, lane-dense.
        # W-pool: one big-M MXU matmul (M = C*TH).
        t = jnp.dot(x3.reshape(C * TH, W), pw, preferred_element_type=jnp.float32)
        # H-pool: VPU row-group sum (no second matmul).
        t = t.reshape(C, THo, f, Wo)
        p = jnp.sum(t, axis=2) * inv_f                       # (C, THo, Wo)
        return p.reshape(C, THo * Wo)

    if remap:
        def kernel(pw_ref, w_ref, b_ref, x_ref, o_ref):
            p = _pool(x_ref[0], pw_ref[...])                  # (C, THo*Wo) f32
            y = jnp.dot(w_ref[...], p, preferred_element_type=jnp.float32) + b_ref[...]
            o_ref[0] = y.astype(o_ref.dtype)
    else:
        def kernel(pw_ref, x_ref, o_ref):
            o_ref[0] = _pool(x_ref[0], pw_ref[...]).astype(o_ref.dtype)
    return kernel


def _conv1x1_kernel(w_ref, b_ref, x_ref, o_ref):
    # w_ref: (Cout, Cin) f32, b_ref: (Cout, 1) f32, x_ref: (1, Cin, TS), o_ref: (1, Cout, TS)
    y = jnp.dot(w_ref[...], x_ref[0], preferred_element_type=jnp.float32) + b_ref[...]
    o_ref[0] = y.astype(o_ref.dtype)


# ---------------------------------------------------------------------------
# Wrappers
# ---------------------------------------------------------------------------
def _conv1x1(x, weight, bias):
    """1x1 Conv2d, tiled over the flattened spatial axis (lane-dense)."""
    N, C, H, W = x.shape
    Cout = weight.shape[0]
    S = H * W
    itemsize = jnp.dtype(x.dtype).itemsize
    TS = _choose_tile_s(C, Cout, S, itemsize)
    n_t = S // TS

    xr = x.reshape(N, C, S)
    w2 = weight.astype(jnp.float32).reshape(Cout, C)
    b2 = bias.astype(jnp.float32).reshape(Cout, 1)

    out = pl.pallas_call(
        _conv1x1_kernel,
        out_shape=jax.ShapeDtypeStruct((N, Cout, S), x.dtype),
        grid=(N, n_t),
        in_specs=[
            pl.BlockSpec((Cout, C), lambda n, t: (0, 0)),
            pl.BlockSpec((Cout, 1), lambda n, t: (0, 0)),
            pl.BlockSpec((1, C, TS), lambda n, t: (n, 0, t)),
        ],
        out_specs=pl.BlockSpec((1, Cout, TS), lambda n, t: (n, 0, t)),
        compiler_params=pltpu.CompilerParams(
            dimension_semantics=("parallel", "parallel"),
            vmem_limit_bytes=_VMEM_LIMIT_BYTES),
    )(w2, b2, xr)
    return out.reshape(N, Cout, H, W)


def spatial_rescale(x, n_stages, weight=None, bias=None):
    """Fused: n_stages of bilinear x0.5 (== one 2^n x 2^n average pool) + optional 1x1 conv."""
    N, C, H, W = x.shape
    f = 2 ** n_stages
    remap = weight is not None

    if f == 1:  # no pooling stages
        return _conv1x1(x, weight, bias) if remap else x

    assert H % f == 0 and W % f == 0, "spatial dims must be divisible by 2**n_stages"
    Ho, Wo = H // f, W // f
    Cout = weight.shape[0] if remap else C
    itemsize = jnp.dtype(x.dtype).itemsize

    TH = _choose_tile_h(C, H, W, f, itemsize)
    n_ht = H // TH
    THo = TH // f

    pw = _pool_matrix(W, f, jnp.dtype(x.dtype).name)          # (W, Wo), cached

    in_specs = [pl.BlockSpec((W, Wo), lambda n, t: (0, 0))]
    args = [pw]
    if remap:
        in_specs += [
            pl.BlockSpec((Cout, C), lambda n, t: (0, 0)),
            pl.BlockSpec((Cout, 1), lambda n, t: (0, 0)),
        ]
        args += [
            weight.astype(jnp.float32).reshape(Cout, C),
            bias.astype(jnp.float32).reshape(Cout, 1),
        ]
    in_specs.append(pl.BlockSpec((1, C, TH, W), lambda n, t: (n, 0, t, 0)))
    args.append(x)

    out = pl.pallas_call(
        _make_pool_kernel(C, TH, W, f, remap),
        out_shape=jax.ShapeDtypeStruct((N, Cout, Ho * Wo), x.dtype),
        grid=(N, n_ht),
        in_specs=in_specs,
        out_specs=pl.BlockSpec((1, Cout, THo * Wo), lambda n, t: (n, 0, t)),
        compiler_params=pltpu.CompilerParams(
            dimension_semantics=("parallel", "parallel"),
            vmem_limit_bytes=_VMEM_LIMIT_BYTES),
    )(*args)
    return out.reshape(N, Cout, Ho, Wo)


# ---------------------------------------------------------------------------
# Module
# ---------------------------------------------------------------------------
class SpatialRescaler:
    def __init__(self, n_stages=1, method="bilinear", multiplier=0.5,
                 in_channels=3, out_channels=None, bias=False, key=None):
        assert n_stages >= 0
        # TODO(synk): only method='bilinear' with multiplier=0.5 is implemented (composed
        # stages are exactly a 2^n x 2^n average pool); other modes/scales need gather-based
        # resampling with fractional weights.
        assert method == "bilinear" and multiplier == 0.5
        self.n_stages = n_stages
        self.remap_output = out_channels is not None
        self.weight = None
        self.bias = None
        if self.remap_output:
            bound = 1.0 / np.sqrt(in_channels)  # Conv2d default init, 1x1 kernel
            kw, kb = jax.random.split(key if key is not None else jax.random.PRNGKey(0))
            self.weight = jax.random.uniform(
                kw, (out_channels, in_channels), jnp.float32, -bound, bound)
            self.bias = (jax.random.uniform(kb, (out_channels,), jnp.float32, -bound, bound)
                         if bias else jnp.zeros((out_channels,), jnp.float32))

    def __call__(self, x):
        return spatial_rescale(
            x, self.n_stages,
            self.weight if self.remap_output else None,
            self.bias if self.remap_output else None)

    def encode(self, x):
        return self(x)


# ---------------------------------------------------------------------------
# Pure-JAX reference for validation
# ---------------------------------------------------------------------------
def _reference(x, n_stages, weight, bias):
    for _ in range(n_stages):
        N, C, H, W = x.shape
        x = x.reshape(N, C, H // 2, 2, W // 2, 2).mean(axis=(3, 5))
    if weight is not None:
        x = jnp.einsum("oc,nchw->nohw", weight, x) + bias[None, :, None, None]
    return x


if __name__ == "__main__":
    key = jax.random.PRNGKey(0)
    kx, k1, k2 = jax.random.split(key, 3)
    x = jax.random.normal(kx, (2, 4, 16, 16), jnp.float32)

    # 1) one downsample stage + channel remap (fused pool + 1x1 conv kernel)
    m1 = SpatialRescaler(n_stages=1, in_channels=4, out_channels=8, bias=False, key=k1)
    y1 = jax.block_until_ready(m1(x))
    r1 = _reference(x, 1, m1.weight, m1.bias)
    np.testing.assert_allclose(np.asarray(y1), np.asarray(r1), rtol=1e-5, atol=1e-5)
    assert y1.shape == (2, 8, 8, 8)

    # 2) two fused stages, no remap (single kernel, precomposed 4x4 average)
    m2 = SpatialRescaler(n_stages=2, in_channels=4, out_channels=None)
    y2 = jax.block_until_ready(m2(x))
    r2 = _reference(x, 2, None, None)
    np.testing.assert_allclose(np.asarray(y2), np.asarray(r2), rtol=1e-5, atol=1e-5)
    assert y2.shape == (2, 4, 4, 4)

    # 3) n_stages=0 with remap (pure tiled 1x1 conv kernel)
    m3 = SpatialRescaler(n_stages=0, in_channels=4, out_channels=6, bias=True, key=k2)
    y3 = jax.block_until_ready(m3(x))
    r3 = _reference(x, 0, m3.weight, m3.bias)
    np.testing.assert_allclose(np.asarray(y3), np.asarray(r3), rtol=1e-5, atol=1e-5)
    assert y3.shape == (2, 6, 16, 16)

    print("KERNEL_OK")
</pallas_src>

<mosaic_0001>
module attributes {stable_mosaic.version = 11 : i64} {
  func.func @kernel(%arg0: i32, %arg1: i32, %arg2: memref<16x8xf32, #tpu.memory_space<vmem>>, %arg3: memref<8x4xf32, #tpu.memory_space<vmem>>, %arg4: memref<8x1xf32, #tpu.memory_space<vmem>>, %arg5: memref<1x4x16x16xf32, #tpu.memory_space<vmem>>, %arg6: memref<1x8x64xf32, #tpu.memory_space<vmem>>) attributes {dimension_semantics = [#tpu.dimension_semantics<parallel>, #tpu.dimension_semantics<parallel>], iteration_bounds = array<i64: 2, 1>, scalar_prefetch = 0 : i64, scratch_operands = 0 : i64, tpu.core_type = #tpu.core_type<tc>, window_params = [{pipeline_mode = #tpu.pipeline_mode<synchronous>, transform_indices = @transform_0, window_bounds = array<i64: 16, 8>}, {pipeline_mode = #tpu.pipeline_mode<synchronous>, transform_indices = @transform_1, window_bounds = array<i64: 8, 4>}, {pipeline_mode = #tpu.pipeline_mode<synchronous>, transform_indices = @transform_2, window_bounds = array<i64: 8, 1>}, {transform_indices = @transform_3, window_bounds = array<i64: 1, 4, 16, 16>}, {transform_indices = @transform_4, window_bounds = array<i64: 1, 8, 64>}]} {
    %c0 = arith.constant 0 : index
    %c0_0 = arith.constant 0 : index
    %c0_1 = arith.constant 0 : index
    %c0_2 = arith.constant 0 : index
    %0 = vector.load %arg5[%c0, %c0_0, %c0_1, %c0_2] : memref<1x4x16x16xf32, #tpu.memory_space<vmem>>, vector<1x4x16x16xf32>
    %1 = vector.shape_cast %0 : vector<1x4x16x16xf32> to vector<4x16x16xf32>
    %c0_3 = arith.constant 0 : index
    %c0_4 = arith.constant 0 : index
    %2 = vector.load %arg2[%c0_3, %c0_4] : memref<16x8xf32, #tpu.memory_space<vmem>>, vector<16x8xf32>
    %3 = vector.shape_cast %1 : vector<4x16x16xf32> to vector<64x16xf32>
    %cst = arith.constant dense<0.000000e+00> : vector<64x8xf32>
    %4 = tpu.matmul %3, %2, %cst {dimension_numbers = #tpu.dot_dimension_numbers<[1], [0], [0], [1], [0, 0, 1, 1], [], []>} : vector<64x16xf32>, vector<16x8xf32>, vector<64x8xf32> -> vector<64x8xf32>
    %5 = vector.shape_cast %4 : vector<64x8xf32> to vector<4x8x2x8xf32>
    %cst_5 = arith.constant dense<0.000000e+00> : vector<4x8x8xf32>
    %6 = vector.multi_reduction <add>, %5, %cst_5 [2] : vector<4x8x2x8xf32> to vector<4x8x8xf32>
    %cst_6 = arith.constant 5.000000e-01 : f32
    %7 = vector.broadcast %cst_6 : f32 to vector<4x8x8xf32>
    %8 = arith.mulf %6, %7 : vector<4x8x8xf32>
    %9 = vector.shape_cast %8 : vector<4x8x8xf32> to vector<4x64xf32>
    %c0_7 = arith.constant 0 : index
    %c0_8 = arith.constant 0 : index
    %10 = vector.load %arg3[%c0_7, %c0_8] : memref<8x4xf32, #tpu.memory_space<vmem>>, vector<8x4xf32>
    %cst_9 = arith.constant dense<0.000000e+00> : vector<8x64xf32>
    %11 = tpu.matmul %10, %9, %cst_9 {dimension_numbers = #tpu.dot_dimension_numbers<[1], [0], [0], [1], [0, 0, 1, 1], [], []>} : vector<8x4xf32>, vector<4x64xf32>, vector<8x64xf32> -> vector<8x64xf32>
    %c0_10 = arith.constant 0 : index
    %c0_11 = arith.constant 0 : index
    %12 = vector.load %arg4[%c0_10, %c0_11] : memref<8x1xf32, #tpu.memory_space<vmem>>, vector<8x1xf32>
    %13 = vector.broadcast %12 : vector<8x1xf32> to vector<8x64xf32>
    %14 = arith.addf %11, %13 : vector<8x64xf32>
    %c0_12 = arith.constant 0 : index
    %c0_13 = arith.constant 0 : index
    %c0_14 = arith.constant 0 : index
    %15 = vector.load %arg6[%c0_12, %c0_13, %c0_14] : memref<1x8x64xf32, #tpu.memory_space<vmem>>, vector<1x8x64xf32>
    %16 = vector.shape_cast %15 : vector<1x8x64xf32> to vector<8x64xf32>
    %17 = vector.shape_cast %14 : vector<8x64xf32> to vector<1x8x64xf32>
    tpu.vector_store %arg6[%c0_12, %c0_13, %c0_14], %17 {strides = array<i32>} : memref<1x8x64xf32, #tpu.memory_space<vmem>>, vector<1x8x64xf32>,
    return
  }
  func.func @transform_0(%arg0: i32, %arg1: i32) -> (i32, i32) {
    %c0_i32 = arith.constant 0 : i32
    %c0_i32_0 = arith.constant 0 : i32
    %c0_i32_1 = arith.constant 0 : i32
    return %c0_i32, %c0_i32_0 : i32, i32
  }
  func.func @transform_1(%arg0: i32, %arg1: i32) -> (i32, i32) {
    %c0_i32 = arith.constant 0 : i32
    %c0_i32_0 = arith.constant 0 : i32
    %c0_i32_1 = arith.constant 0 : i32
    return %c0_i32, %c0_i32_0 : i32, i32
  }
  func.func @transform_2(%arg0: i32, %arg1: i32) -> (i32, i32) {
    %c0_i32 = arith.constant 0 : i32
    %c0_i32_0 = arith.constant 0 : i32
    %c0_i32_1 = arith.constant 0 : i32
    return %c0_i32, %c0_i32_0 : i32, i32
  }
  func.func @transform_3(%arg0: i32, %arg1: i32) -> (i32, i32, i32, i32) {
    %c0_i32 = arith.constant 0 : i32
    %c0_i32_0 = arith.constant 0 : i32
    %c0_i32_1 = arith.constant 0 : i32
    return %arg0, %c0_i32, %arg1, %c0_i32_0 : i32, i32, i32, i32
  }
  func.func @transform_4(%arg0: i32, %arg1: i32) -> (i32, i32, i32) {
    %c0_i32 = arith.constant 0 : i32
    %c0_i32_0 = arith.constant 0 : i32
    return %arg0, %c0_i32, %arg1 : i32, i32, i32
  }
}

</mosaic_0001>

<llo_original>
// kernel: tpu_custom_call.1
$region0: #{tpu_custom_call.1}
  #allocation0 [shape = 'u32[]', space=smem, size = 0x4, offset = 0x4, fixed_abs, tag = 'smem constant byte address 0x4 - core index']
  #allocation1 [shape = 'u32[144,128]{1,0:T(1,128)}', space=vmem, size = 0x12000, scoped, tag = 'internal scratch']
  %s0 = inlined_call_operand.vmem [shape: f32[16,8], index: 0, kind: input, shape index: {}]
  %s1 = inlined_call_operand.vmem [shape: f32[8,4], index: 1, kind: input, shape index: {}]
  %s2 = inlined_call_operand.vmem [shape: f32[8,1], index: 2, kind: input, shape index: {}]
  %s3 = inlined_call_operand.hbm [shape: f32[2,4,16,16], index: 3, kind: input, shape index: {}]
  %s4 = inlined_call_operand.hbm [shape: f32[2,8,64], index: 4, kind: output, shape index: {}]
  %s5 = sld [smem:[#allocation0]]
  $region53: #{tpu_custom_call.1} parent=0
    _
  %s7 = ssub.s32 1, %s5
  %s8 = scalar_select 0, %s7, %s5
  $region1: #{tpu_custom_call.1} parent=0
    #allocation2 [shape = 'u8[65536]{0}', space=vmem, size = 0x10000, scoped, tag = 'input window, operand 3']
    #allocation3 [shape = 's32[2]{0}', space=sflag, size = 0x8, scoped, tag = 'scoped memory for tpu_custom_call.1']
    #allocation4 [shape = 's32[2]{0}', space=sflag, size = 0x8, scoped, tag = 'scoped memory for tpu_custom_call.1']
    #allocation5 [shape = 'u8[8192]{0}', space=vmem, size = 0x2000, scoped, tag = 'output window, operand 0']
    %9 = vsyncpa [#allocation3], 0
    %s10 = scalar_lea.sflag [#allocation3], 1
    %11 = vsyncpa %s10, 0
    %12 = vsyncpa [#allocation4], 0
    %s13 = scalar_lea.sflag [#allocation4], 1
    %14 = vsyncpa %s13, 0
    loop: start=0, step=1, limit=4
    $region2: #{tpu_custom_call.1} parent=1 // loop_pre_header
      _
    $region3: #{tpu_custom_call.1} parent=1 // loop_header
      %s16 = sphi 0, %s20
      %p17 = scmp.ge.s32.totalorder %s16, 4
      %s23 = sphi 0, %s35
      %s24 = sphi 0, %s31
      %s25 = sphi 0, %s23
      %s26 = sphi 0, %s24
      %s27 = sphi 0, %s25
      %s28 = sphi 0, %s26
      %s36 = sphi 0, %s36
      %s38 = sphi 0, %s36
      %s39 = sphi 0, %s38
      %s53 = sphi 0, %s39
      %s57 = sphi 0, %s57
      %s59 = sphi 0, %s57
      %s60 = sphi 0, %s59
      %s74 = sphi 0, %s60
      %s78 = sphi 0, %s78
      %s80 = sphi 0, %s78
      %s81 = sphi 0, %s80
      %s95 = sphi 0, %s81
      %s103 = sphi 0, %s105
      %s106 = sphi 0, %s103
      %s107 = sphi 0, %s106
      %s123 = sphi 0, %s107
      %s131 = sphi 0, %s133
      %s134 = sphi 0, %s131
      %s135 = sphi 0, %s134
      %s151 = sphi 0, %s135
    $region4: #{tpu_custom_call.1} parent=1 // loop_header_branch
      %19 = sbr.rel (%p17) target = $region8
    $region5: #{tpu_custom_call.1} parent=1 // loop_body
      %s21 = ssub.s32 %s16, 1
      %s22 = ssub.s32 %s16, 2
      %s29 = sadd.s32 1, %s24
      %p30 = scmp.ge.s32.totalorder %s29, 1
      %s31 = scalar_select %p30, 0, %s29
      %s32 = sadd.s32 1, %s23
      %s33 = scalar_select %p30, %s32, %s23
      %p34 = scmp.ge.s32.totalorder %s33, 2
      %s35 = scalar_select %p34, 0, %s33
      %s37 = sadd.s32 %s36, 1
      %p40 = scmp.eq.s32.totalorder %s16, 1
      %p41 = scmp.ne.s32.totalorder %s36, %s38
      %p42 = scmp.eq.s32.totalorder %s16, 0
      %p43 = por %p41, %p42
      %p44 = scmp.ne.s32.totalorder %s36, %s38
      %p45 = scmp.eq.s32.totalorder %s21, 1
      %p46 = por %p44, %p45
      %p47 = scmp.ne.s32.totalorder %s38, %s39
      %p48 = scmp.eq.s32.totalorder %s21, 0
      %p49 = por %p47, %p48
      %p50 = scmp.ne.s32.totalorder %s38, %s39
      %p51 = scmp.eq.s32.totalorder %s22, 1
      %p52 = por %p50, %p51
      %p54 = scmp.ne.s32.totalorder %s39, %s53
      %p55 = scmp.eq.s32.totalorder %s22, 0
      %p56 = por %p54, %p55
      %s58 = sadd.s32 %s57, 1
      %p61 = scmp.eq.s32.totalorder %s16, 1
      %p62 = scmp.ne.s32.totalorder %s57, %s59
      %p63 = scmp.eq.s32.totalorder %s16, 0
      %p64 = por %p62, %p63
      %p65 = scmp.ne.s32.totalorder %s57, %s59
      %p66 = scmp.eq.s32.totalorder %s21, 1
      %p67 = por %p65, %p66
      %p68 = scmp.ne.s32.totalorder %s59, %s60
      %p69 = scmp.eq.s32.totalorder %s21, 0
      %p70 = por %p68, %p69
      %p71 = scmp.ne.s32.totalorder %s59, %s60
      %p72 = scmp.eq.s32.totalorder %s22, 1
      %p73 = por %p71, %p72
      %p75 = scmp.ne.s32.totalorder %s60, %s74
      %p76 = scmp.eq.s32.totalorder %s22, 0
      %p77 = por %p75, %p76
      %s79 = sadd.s32 %s78, 1
      %p82 = scmp.eq.s32.totalorder %s16, 1
      %p83 = scmp.ne.s32.totalorder %s78, %s80
      %p84 = scmp.eq.s32.totalorder %s16, 0
      %p85 = por %p83, %p84
      %p86 = scmp.ne.s32.totalorder %s78, %s80
      %p87 = scmp.eq.s32.totalorder %s21, 1
      %p88 = por %p86, %p87
      %p89 = scmp.ne.s32.totalorder %s80, %s81
      %p90 = scmp.eq.s32.totalorder %s21, 0
      %p91 = por %p89, %p90
      %p92 = scmp.ne.s32.totalorder %s80, %s81
      %p93 = scmp.eq.s32.totalorder %s22, 1
      %p94 = por %p92, %p93
      %p96 = scmp.ne.s32.totalorder %s81, %s95
      %p97 = scmp.eq.s32.totalorder %s22, 0
      %p98 = por %p96, %p97
      %s99 = ssub.s32 %s23, %s35
      %s100 = ssub.s32 %s24, %s31
      %s101 = sor.u32 %s99, %s100
      %p102 = scmp.eq.s32.totalorder %s101, 0
      %s104 = sadd.s32 %s103, 1
      %s105 = scalar_select %p102, %s103, %s104
      %p108 = pneg %p102
      %p109 = scmp.eq.s32.totalorder %s16, 1
      %p110 = por %p108, %p109
      %p111 = scmp.ne.s32.totalorder %s103, %s106
      %p112 = scmp.eq.s32.totalorder %s16, 0
      %p113 = por %p111, %p112
      %p114 = scmp.ne.s32.totalorder %s103, %s106
      %p115 = scmp.eq.s32.totalorder %s21, 1
      %p116 = por %p114, %p115
      %p117 = scmp.ne.s32.totalorder %s106, %s107
      %p118 = scmp.eq.s32.totalorder %s21, 0
      %p119 = por %p117, %p118
      %p120 = scmp.ne.s32.totalorder %s106, %s107
      %p121 = scmp.eq.s32.totalorder %s22, 1
      %p122 = por %p120, %p121
      %p124 = scmp.ne.s32.totalorder %s107, %s123
      %p125 = scmp.eq.s32.totalorder %s22, 0
      %p126 = por %p124, %p125
      %s127 = ssub.s32 %s23, %s35
      %s128 = ssub.s32 %s24, %s31
      %s129 = sor.u32 %s127, %s128
      %p130 = scmp.eq.s32.totalorder %s129, 0
      %s132 = sadd.s32 %s131, 1
      %s133 = scalar_select %p130, %s131, %s132
      %p136 = pneg %p130
      %p137 = scmp.eq.s32.totalorder %s16, 1
      %p138 = por %p136, %p137
      %p139 = scmp.ne.s32.totalorder %s131, %s134
      %p140 = scmp.eq.s32.totalorder %s16, 0
      %p141 = por %p139, %p140
      %p142 = scmp.ne.s32.totalorder %s131, %s134
      %p143 = scmp.eq.s32.totalorder %s21, 1
      %p144 = por %p142, %p143
      %p145 = scmp.ne.s32.totalorder %s134, %s135
      %p146 = scmp.eq.s32.totalorder %s21, 0
      %p147 = por %p145, %p146
      %p148 = scmp.ne.s32.totalorder %s134, %s135
      %p149 = scmp.eq.s32.totalorder %s22, 1
      %p150 = por %p148, %p149
      %p152 = scmp.ne.s32.totalorder %s135, %s151
      %p153 = scmp.eq.s32.totalorder %s22, 0
      %p154 = por %p152, %p153
      %p155 = scmp.le.s32.totalorder 1, %s16
      %p156 = scmp.lt.s32.totalorder %s16, 3
      %p157 = pnand %p155, %p156
      %p158 = pneg %p157
      // Predicated region
      $region9: #{tpu_custom_call.1} parent=5 // pred_check
        _
      $region10: #{tpu_custom_call.1} parent=5 // pred_check_branch
        %160 = sbr.rel (%p157) target = $region12
      $region11: #{tpu_custom_call.1} parent=5 // pred_region
        %s161 = ssub.s32 %s16, 1
        // Predicated region
        $region13: #{tpu_custom_call.1} parent=11 // pred_check
          %p162 = pneg %p49
        $region14: #{tpu_custom_call.1} parent=11 // pred_check_branch
          %164 = sbr.rel (%p162) target = $region16
        $region15: #{tpu_custom_call.1} parent=11 // pred_region
          _
        $region16: #{tpu_custom_call.1} parent=11 // pred_fallthru
          _
        // Predicated region
        $region17: #{tpu_custom_call.1} parent=11 // pred_check
          %p165 = pneg %p70
        $region18: #{tpu_custom_call.1} parent=11 // pred_check_branch
          %167 = sbr.rel (%p165) target = $region20
        $region19: #{tpu_custom_call.1} parent=11 // pred_region
          _
        $region20: #{tpu_custom_call.1} parent=11 // pred_fallthru
          _
        // Predicated region
        $region21: #{tpu_custom_call.1} parent=11 // pred_check
          %p168 = pneg %p91
        $region22: #{tpu_custom_call.1} parent=11 // pred_check_branch
          %170 = sbr.rel (%p168) target = $region24
        $region23: #{tpu_custom_call.1} parent=11 // pred_region
          _
        $region24: #{tpu_custom_call.1} parent=11 // pred_fallthru
          _
      $region12: #{tpu_custom_call.1} parent=5 // pred_fallthru
        _
      %p171 = scmp.lt.s32.totalorder %s16, 2
      // Predicated region
      $region25: #{tpu_custom_call.1} parent=5 // pred_check
        %p172 = pneg %p171
      $region26: #{tpu_custom_call.1} parent=5 // pred_check_branch
        %174 = sbr.rel (%p172) target = $region28
      $region27: #{tpu_custom_call.1} parent=5 // pred_region
        // Predicated region
        $region29: #{tpu_custom_call.1} parent=27 // pred_check
          %p175 = pneg %p113
        $region30: #{tpu_custom_call.1} parent=27 // pred_check_branch
          %177 = sbr.rel (%p175) target = $region32
        $region31: #{tpu_custom_call.1} parent=27 // pred_region
          %s178 = sand.u32 %s103, 1
          %s179 = scalar_lea.sflag [#allocation3], %s178
          %s180 = sand.u32 %s103, 1
          %s181 = smul.addr %s180, 64
          %s182 = scalar_lea.vmem [#allocation2], %s181
          %s183 = smul.u32 2, %s24
          %s185 = ssub.s32 1024, 1024
          %186 = vsyncadd %s179, %s185
          %s187 = smul.addr %s23, 8
          %s188 = sadd.s32 %s183, %s187
          %s189 = smul.addr %s188, 128
          %s190 = scalar_lea.hbm %s3, %s189
          %s191 = sshll.u32 %s182, 4
          %s192 = int_to_ptr.vmem [resolvable:$true] %s191
          %197 = dma.hbm_to_vmem [thread:$0]  %s190, 1024, %s192, %s179, 128, 128, 8
        $region32: #{tpu_custom_call.1} parent=27 // pred_fallthru
          _
      $region28: #{tpu_custom_call.1} parent=5 // pred_fallthru
        _
      %p198 = scmp.le.s32.totalorder 1, %s16
      %p199 = scmp.lt.s32.totalorder %s16, 3
      %p200 = pnand %p198, %p199
      %p201 = pneg %p200
      // Predicated region
      $region33: #{tpu_custom_call.1} parent=5 // pred_check
        _
      $region34: #{tpu_custom_call.1} parent=5 // pred_check_branch
        %203 = sbr.rel (%p200) target = $region36
      $region35: #{tpu_custom_call.1} parent=5 // pred_region
        %s204 = ssub.s32 %s16, 1
        %s205 = sand.u32 %s106, 1
        %s206 = scalar_lea.sflag [#allocation3], %s205
        %s207 = sand.u32 %s106, 1
        %s208 = smul.addr %s207, 64
        %s209 = scalar_lea.vmem [#allocation2], %s208
        // Predicated region
        $region37: #{tpu_custom_call.1} parent=35 // pred_check
          %p210 = pneg %p119
        $region38: #{tpu_custom_call.1} parent=35 // pred_check_branch
          %212 = sbr.rel (%p210) target = $region40
        $region39: #{tpu_custom_call.1} parent=35 // pred_region
          %213 = dma.done %s206, 1024
        $region40: #{tpu_custom_call.1} parent=35 // pred_fallthru
          _
        %p214 = pneg %p49
        %p215 = pneg %p46
        %p216 = pneg %p70
        %p217 = pneg %p67
        %p218 = pneg %p91
        %p219 = pneg %p88
        %s220 = sand.u32 %s106, 1
        %s221 = scalar_lea.sflag [#allocation3], %s220
        %s222 = sand.u32 %s106, 1
        %s223 = smul.addr %s222, 64
        %s224 = scalar_lea.vmem [#allocation2], %s223
        %p225 = pneg %p119
        %p226 = pneg %p116
        %p227 = pneg %p147
        %p228 = pneg %p144
        %s229 = sand.u32 %s134, 1
        %s230 = scalar_lea.sflag [#allocation4], %s229
        %s231 = sand.u32 %s134, 1
        %s232 = smul.addr %s231, 8
        %s233 = scalar_lea.vmem [#allocation5], %s232
        %s234 = smul.u32 2, %s26
        %v235 = vld [vmem:[%s209] sm:$0xff]
        %v236 = vld [vmem:[%s209 + $0x8] sm:$0xff]
        %v237 = vld [vmem:[%s209 + $0x10] sm:$0xff]
        %v238 = vld [vmem:[%s209 + $0x18] sm:$0xff]
        %v239 = vld [vmem:[%s209 + $0x20] sm:$0xff]
        %v240 = vld [vmem:[%s209 + $0x28] sm:$0xff]
        %v241 = vld [vmem:[%s209 + $0x30] sm:$0xff]
        %v242 = vld [vmem:[%s209 + $0x38] sm:$0xff]
        %v243 = vld [vmem:[%s0] sm:$0xff]
        %v244 = vld [vmem:[%s0 + $0x8] sm:$0xff]
        %vm245 = vcmask 130048
        %v247 = vsel %vm245, %v235, 0
        %v250 = vsel %vm245, %v236, 0
        %v253 = vsel %vm245, %v237, 0
        %v256 = vsel %vm245, %v238, 0
        %v259 = vsel %vm245, %v239, 0
        %v262 = vsel %vm245, %v240, 0
        %v265 = vsel %vm245, %v241, 0
        %v268 = vsel %vm245, %v242, 0
        %270 = vmatprep.subr.mxu0 0.0
        %271 = vmatpush1.msra.mxu0 %v243
        %272 = vmatprep.subr.mxu0 0.0
        %273 = vmatpush1.msra.mxu0 %v244
        %274 = vmatprep.subr.mxu0 0.0
        %275 = vmatpush1.msra.mxu0 0.0
        %276 = vmatprep.subr.mxu0 0.0
        %277 = vmatpush1.msra.mxu0 0.0
        %278 = vmatprep.subr.mxu0 0.0
        %279 = vmatpush1.msra.mxu0 0.0
        %280 = vmatprep.subr.mxu0 0.0
        %281 = vmatpush1.msra.mxu0 0.0
        %282 = vmatprep.subr.mxu0 0.0
        %283 = vmatpush1.msra.mxu0 0.0
        %284 = vmatprep.subr.mxu0 0.0
        %285 = vmatpush1.msra.mxu0 0.0
        %286 = vmatprep.subr.mxu0 0.0
        %287 = vmatpush1.msra.mxu0 0.0
        %288 = vmatprep.subr.mxu0 0.0
        %289 = vmatpush1.msra.mxu0 0.0
        %290 = vmatprep.subr.mxu0 0.0
        %291 = vmatpush1.msra.mxu0 0.0
        %292 = vmatprep.subr.mxu0 0.0
        %293 = vmatpush1.msra.mxu0 0.0
        %294 = vmatprep.subr.mxu0 0.0
        %295 = vmatpush1.msra.mxu0 0.0
        %296 = vmatprep.subr.mxu0 0.0
        %297 = vmatpush1.msra.mxu0 0.0
        %298 = vmatprep.subr.mxu0 0.0
        %299 = vmatpush1.msra.mxu0 0.0
        %300 = vmatprep.subr.mxu0 0.0
        %301 = vmatpush1.msra.mxu0 0.0
        %302 = vmatprep.subr.mxu0 0.0
        %303 = vmatpush1.msra.mxu0 0.0
        %304 = vmatprep.subr.mxu0 0.0
        %305 = vmatpush1.msra.mxu0 0.0
        %306 = vmatprep.subr.mxu0 0.0
        %307 = vmatpush1.msra.mxu0 0.0
        %308 = vmatprep.subr.mxu0 0.0
        %309 = vmatpush1.msra.mxu0 0.0
        %310 = vmatprep.subr.mxu0 0.0
        %311 = vmatpush1.msra.mxu0 0.0
        %312 = vmatprep.subr.mxu0 0.0
        %313 = vmatpush1.msra.mxu0 0.0
        %314 = vmatprep.subr.mxu0 0.0
        %315 = vmatpush1.msra.mxu0 0.0
        %316 = vmatprep.subr.mxu0 0.0
        %317 = vmatpush1.msra.mxu0 0.0
        %318 = vmatprep.subr.mxu0 0.0
        %319 = vmatpush1.msra.mxu0 0.0
        %320 = vmatprep.subr.mxu0 0.0
        %321 = vmatpush1.msra.mxu0 0.0
        %322 = vmatprep.subr.mxu0 0.0
        %323 = vmatpush1.msra.mxu0 0.0
        %324 = vmatprep.subr.mxu0 0.0
        %325 = vmatpush1.msra.mxu0 0.0
        %326 = vmatprep.subr.mxu0 0.0
        %327 = vmatpush1.msra.mxu0 0.0
        %328 = vmatprep.subr.mxu0 0.0
        %329 = vmatpush1.msra.mxu0 0.0
        %330 = vmatprep.subr.mxu0 0.0
        %331 = vmatpush1.msra.mxu0 0.0
        %332 = vmatprep.subr.mxu0 0.0
        %333 = vmatpush1.msra.mxu0 0.0
        %334 = vmatprep.mubr.f32.mxu0 0.0
        %335 = vmatmul.mubr.f32.gmra.mrb[0].mxu0 %v247
        %v336 = vpop.f32.mrb[0].mxu0
        %v337 = vadd.f32 0.0, %v336
        %v338 = vpop.f32.mrb[0].mxu0
        %339 = vmatprep.mubr.f32.mxu0 0.0
        %340 = vmatmul.mubr.f32.gmra.mrb[0].mxu0 %v250
        %v341 = vpop.f32.mrb[0].mxu0
        %v342 = vadd.f32 0.0, %v341
        %v343 = vpop.f32.mrb[0].mxu0
        %344 = vmatprep.mubr.f32.mxu0 0.0
        %345 = vmatmul.mubr.f32.gmra.mrb[0].mxu0 %v253
        %v346 = vpop.f32.mrb[0].mxu0
        %v347 = vadd.f32 0.0, %v346
        %v348 = vpop.f32.mrb[0].mxu0
        %349 = vmatprep.mubr.f32.mxu0 0.0
        %350 = vmatmul.mubr.f32.gmra.mrb[0].mxu0 %v256
        %v351 = vpop.f32.mrb[0].mxu0
        %v352 = vadd.f32 0.0, %v351
        %v353 = vpop.f32.mrb[0].mxu0
        %354 = vmatprep.mubr.f32.mxu0 0.0
        %355 = vmatmul.mubr.f32.gmra.mrb[0].mxu0 %v259
        %v356 = vpop.f32.mrb[0].mxu0
        %v357 = vadd.f32 0.0, %v356
        %v358 = vpop.f32.mrb[0].mxu0
        %359 = vmatprep.mubr.f32.mxu0 0.0
        %360 = vmatmul.mubr.f32.gmra.mrb[0].mxu0 %v262
        %v361 = vpop.f32.mrb[0].mxu0
        %v362 = vadd.f32 0.0, %v361
        %v363 = vpop.f32.mrb[0].mxu0
        %364 = vmatprep.mubr.f32.mxu0 0.0
        %365 = vmatmul.mubr.f32.gmra.mrb[0].mxu0 %v265
        %v366 = vpop.f32.mrb[0].mxu0
        %v367 = vadd.f32 0.0, %v366
        %v368 = vpop.f32.mrb[0].mxu0
        %369 = vmatprep.mubr.f32.mxu0 0.0
        %370 = vmatmul.mubr.f32.gmra.mrb[0].mxu0 %v268
        %v371 = vpop.f32.mrb[0].mxu0
        %v372 = vadd.f32 0.0, %v371
        %v373 = vpop.f32.mrb[0].mxu0
        %374 = vdwg.mxu0
        %v383 = vcombine.high %v337, %v337
        %v385 = vunpack.c.l.s4 1983009808
        %v386 = vunpack.c.0.s8 %v385
        %v387 = vlaneseq
        %v388 = vshrl.u32 %v387, 7
        %v389 = vsub.s32 %v386, %v388
        %v390 = vrot.slane %v337, %v389
        %v392 = vunpack.c.l.s4 1983009808
        %v393 = vunpack.c.0.s8 %v392
        %v394 = vlaneseq
        %v395 = vshrl.u32 %v394, 7
        %v396 = vsub.s32 %v393, %v395
        %v397 = vrot.slane %v383, %v396
        %v398 = vcombine.high %v390, %v390
        %v399 = vcombine.high %v397, %v397
        %v400 = vcombine.high %v342, %v342
        %v402 = vunpack.c.l.s4 1983009808
        %v403 = vunpack.c.0.s8 %v402
        %v404 = vlaneseq
        %v405 = vshrl.u32 %v404, 7
        %v406 = vsub.s32 %v403, %v405
        %v407 = vrot.slane %v342, %v406
        %v409 = vunpack.c.l.s4 1983009808
        %v410 = vunpack.c.0.s8 %v409
        %v411 = vlaneseq
        %v412 = vshrl.u32 %v411, 7
        %v413 = vsub.s32 %v410, %v412
        %v414 = vrot.slane %v400, %v413
        %v415 = vcombine.high %v407, %v407
        %v416 = vcombine.high %v414, %v414
        %v417 = vcombine.high %v347, %v347
        %v419 = vunpack.c.l.s4 1983009808
        %v420 = vunpack.c.0.s8 %v419
        %v421 = vlaneseq
        %v422 = vshrl.u32 %v421, 7
        %v423 = vsub.s32 %v420, %v422
        %v424 = vrot.slane %v347, %v423
        %v426 = vunpack.c.l.s4 1983009808
        %v427 = vunpack.c.0.s8 %v426
        %v428 = vlaneseq
        %v429 = vshrl.u32 %v428, 7
        %v430 = vsub.s32 %v427, %v429
        %v431 = vrot.slane %v417, %v430
        %v432 = vcombine.high %v424, %v424
        %v433 = vcombine.high %v431, %v431
        %v434 = vcombine.high %v352, %v352
        %v436 = vunpack.c.l.s4 1983009808
        %v437 = vunpack.c.0.s8 %v436
        %v438 = vlaneseq
        %v439 = vshrl.u32 %v438, 7
        %v440 = vsub.s32 %v437, %v439
        %v441 = vrot.slane %v352, %v440
        %v443 = vunpack.c.l.s4 1983009808
        %v444 = vunpack.c.0.s8 %v443
        %v445 = vlaneseq
        %v446 = vshrl.u32 %v445, 7
        %v447 = vsub.s32 %v444, %v446
        %v448 = vrot.slane %v434, %v447
        %v449 = vcombine.high %v441, %v441
        %v450 = vcombine.high %v448, %v448
        %v451 = vcombine.high %v357, %v357
        %v453 = vunpack.c.l.s4 1983009808
        %v454 = vunpack.c.0.s8 %v453
        %v455 = vlaneseq
        %v456 = vshrl.u32 %v455, 7
        %v457 = vsub.s32 %v454, %v456
        %v458 = vrot.slane %v357, %v457
        %v460 = vunpack.c.l.s4 1983009808
        %v461 = vunpack.c.0.s8 %v460
        %v462 = vlaneseq
        %v463 = vshrl.u32 %v462, 7
        %v464 = vsub.s32 %v461, %v463
        %v465 = vrot.slane %v451, %v464
        %v466 = vcombine.high %v458, %v458
        %v467 = vcombine.high %v465, %v465
        %v468 = vcombine.high %v362, %v362
        %v470 = vunpack.c.l.s4 1983009808
        %v471 = vunpack.c.0.s8 %v470
        %v472 = vlaneseq
        %v473 = vshrl.u32 %v472, 7
        %v474 = vsub.s32 %v471, %v473
        %v475 = vrot.slane %v362, %v474
        %v477 = vunpack.c.l.s4 1983009808
        %v478 = vunpack.c.0.s8 %v477
        %v479 = vlaneseq
        %v480 = vshrl.u32 %v479, 7
        %v481 = vsub.s32 %v478, %v480
        %v482 = vrot.slane %v468, %v481
        %v483 = vcombine.high %v475, %v475
        %v484 = vcombine.high %v482, %v482
        %v485 = vcombine.high %v367, %v367
        %v487 = vunpack.c.l.s4 1983009808
        %v488 = vunpack.c.0.s8 %v487
        %v489 = vlaneseq
        %v490 = vshrl.u32 %v489, 7
        %v491 = vsub.s32 %v488, %v490
        %v492 = vrot.slane %v367, %v491
        %v494 = vunpack.c.l.s4 1983009808
        %v495 = vunpack.c.0.s8 %v494
        %v496 = vlaneseq
        %v497 = vshrl.u32 %v496, 7
        %v498 = vsub.s32 %v495, %v497
        %v499 = vrot.slane %v485, %v498
        %v500 = vcombine.high %v492, %v492
        %v501 = vcombine.high %v499, %v499
        %v502 = vcombine.high %v372, %v372
        %v504 = vunpack.c.l.s4 1983009808
        %v505 = vunpack.c.0.s8 %v504
        %v506 = vlaneseq
        %v507 = vshrl.u32 %v506, 7
        %v508 = vsub.s32 %v505, %v507
        %v509 = vrot.slane %v372, %v508
        %v511 = vunpack.c.l.s4 1983009808
        %v512 = vunpack.c.0.s8 %v511
        %v513 = vlaneseq
        %v514 = vshrl.u32 %v513, 7
        %v515 = vsub.s32 %v512, %v514
        %v516 = vrot.slane %v502, %v515
        %v517 = vcombine.high %v509, %v509
        %v518 = vcombine.high %v516, %v516
        %vm551 = vcmask 58368
        %v552 = vsel %vm551, %v390, 0.0
        %v553 = vrot.slane %v552, 4
        %v554 = vadd.f32 %v552, %v553
        %v555 = vrot.slane %v554, 2
        %v556 = vadd.f32 %v554, %v555
        %v557 = vrot.slane %v556, 1
        %v558 = vadd.f32 %v556, %v557
        %v559 = vsel %vm551, %v398, 0.0
        %v560 = vrot.slane %v559, 4
        %v561 = vadd.f32 %v559, %v560
        %v562 = vrot.slane %v561, 2
        %v563 = vadd.f32 %v561, %v562
        %v564 = vrot.slane %v563, 1
        %v565 = vadd.f32 %v563, %v564
        %v566 = vsel %vm551, %v397, 0.0
        %v567 = vrot.slane %v566, 4
        %v568 = vadd.f32 %v566, %v567
        %v569 = vrot.slane %v568, 2
        %v570 = vadd.f32 %v568, %v569
        %v571 = vrot.slane %v570, 1
        %v572 = vadd.f32 %v570, %v571
        %v573 = vsel %vm551, %v399, 0.0
        %v574 = vrot.slane %v573, 4
        %v575 = vadd.f32 %v573, %v574
        %v576 = vrot.slane %v575, 2
        %v577 = vadd.f32 %v575, %v576
        %v578 = vrot.slane %v577, 1
        %v579 = vadd.f32 %v577, %v578
        %v580 = vsel %vm551, %v407, 0.0
        %v581 = vrot.slane %v580, 4
        %v582 = vadd.f32 %v580, %v581
        %v583 = vrot.slane %v582, 2
        %v584 = vadd.f32 %v582, %v583
        %v585 = vrot.slane %v584, 1
        %v586 = vadd.f32 %v584, %v585
        %v587 = vsel %vm551, %v415, 0.0
        %v588 = vrot.slane %v587, 4
        %v589 = vadd.f32 %v587, %v588
        %v590 = vrot.slane %v589, 2
        %v591 = vadd.f32 %v589, %v590
        %v592 = vrot.slane %v591, 1
        %v593 = vadd.f32 %v591, %v592
        %v594 = vsel %vm551, %v414, 0.0
        %v595 = vrot.slane %v594, 4
        %v596 = vadd.f32 %v594, %v595
        %v597 = vrot.slane %v596, 2
        %v598 = vadd.f32 %v596, %v597
        %v599 = vrot.slane %v598, 1
        %v600 = vadd.f32 %v598, %v599
        %v601 = vsel %vm551, %v416, 0.0
        %v602 = vrot.slane %v601, 4
        %v603 = vadd.f32 %v601, %v602
        %v604 = vrot.slane %v603, 2
        %v605 = vadd.f32 %v603, %v604
        %v606 = vrot.slane %v605, 1
        %v607 = vadd.f32 %v605, %v606
        %v608 = vsel %vm551, %v424, 0.0
        %v609 = vrot.slane %v608, 4
        %v610 = vadd.f32 %v608, %v609
        %v611 = vrot.slane %v610, 2
        %v612 = vadd.f32 %v610, %v611
        %v613 = vrot.slane %v612, 1
        %v614 = vadd.f32 %v612, %v613
        %v615 = vsel %vm551, %v432, 0.0
        %v616 = vrot.slane %v615, 4
        %v617 = vadd.f32 %v615, %v616
        %v618 = vrot.slane %v617, 2
        %v619 = vadd.f32 %v617, %v618
        %v620 = vrot.slane %v619, 1
        %v621 = vadd.f32 %v619, %v620
        %v622 = vsel %vm551, %v431, 0.0
        %v623 = vrot.slane %v622, 4
        %v624 = vadd.f32 %v622, %v623
        %v625 = vrot.slane %v624, 2
        %v626 = vadd.f32 %v624, %v625
        %v627 = vrot.slane %v626, 1
        %v628 = vadd.f32 %v626, %v627
        %v629 = vsel %vm551, %v433, 0.0
        %v630 = vrot.slane %v629, 4
        %v631 = vadd.f32 %v629, %v630
        %v632 = vrot.slane %v631, 2
        %v633 = vadd.f32 %v631, %v632
        %v634 = vrot.slane %v633, 1
        %v635 = vadd.f32 %v633, %v634
        %v636 = vsel %vm551, %v441, 0.0
        %v637 = vrot.slane %v636, 4
        %v638 = vadd.f32 %v636, %v637
        %v639 = vrot.slane %v638, 2
        %v640 = vadd.f32 %v638, %v639
        %v641 = vrot.slane %v640, 1
        %v642 = vadd.f32 %v640, %v641
        %v643 = vsel %vm551, %v449, 0.0
        %v644 = vrot.slane %v643, 4
        %v645 = vadd.f32 %v643, %v644
        %v646 = vrot.slane %v645, 2
        %v647 = vadd.f32 %v645, %v646
        %v648 = vrot.slane %v647, 1
        %v649 = vadd.f32 %v647, %v648
        %v650 = vsel %vm551, %v448, 0.0
        %v651 = vrot.slane %v650, 4
        %v652 = vadd.f32 %v650, %v651
        %v653 = vrot.slane %v652, 2
        %v654 = vadd.f32 %v652, %v653
        %v655 = vrot.slane %v654, 1
        %v656 = vadd.f32 %v654, %v655
        %v657 = vsel %vm551, %v450, 0.0
        %v658 = vrot.slane %v657, 4
        %v659 = vadd.f32 %v657, %v658
        %v660 = vrot.slane %v659, 2
        %v661 = vadd.f32 %v659, %v660
        %v662 = vrot.slane %v661, 1
        %v663 = vadd.f32 %v661, %v662
        %v664 = vsel %vm551, %v458, 0.0
        %v665 = vrot.slane %v664, 4
        %v666 = vadd.f32 %v664, %v665
        %v667 = vrot.slane %v666, 2
        %v668 = vadd.f32 %v666, %v667
        %v669 = vrot.slane %v668, 1
        %v670 = vadd.f32 %v668, %v669
        %v671 = vsel %vm551, %v466, 0.0
        %v672 = vrot.slane %v671, 4
        %v673 = vadd.f32 %v671, %v672
        %v674 = vrot.slane %v673, 2
        %v675 = vadd.f32 %v673, %v674
        %v676 = vrot.slane %v675, 1
        %v677 = vadd.f32 %v675, %v676
        %v678 = vsel %vm551, %v465, 0.0
        %v679 = vrot.slane %v678, 4
        %v680 = vadd.f32 %v678, %v679
        %v681 = vrot.slane %v680, 2
        %v682 = vadd.f32 %v680, %v681
        %v683 = vrot.slane %v682, 1
        %v684 = vadd.f32 %v682, %v683
        %v685 = vsel %vm551, %v467, 0.0
        %v686 = vrot.slane %v685, 4
        %v687 = vadd.f32 %v685, %v686
        %v688 = vrot.slane %v687, 2
        %v689 = vadd.f32 %v687, %v688
        %v690 = vrot.slane %v689, 1
        %v691 = vadd.f32 %v689, %v690
        %v692 = vsel %vm551, %v475, 0.0
        %v693 = vrot.slane %v692, 4
        %v694 = vadd.f32 %v692, %v693
        %v695 = vrot.slane %v694, 2
        %v696 = vadd.f32 %v694, %v695
        %v697 = vrot.slane %v696, 1
        %v698 = vadd.f32 %v696, %v697
        %v699 = vsel %vm551, %v483, 0.0
        %v700 = vrot.slane %v699, 4
        %v701 = vadd.f32 %v699, %v700
        %v702 = vrot.slane %v701, 2
        %v703 = vadd.f32 %v701, %v702
        %v704 = vrot.slane %v703, 1
        %v705 = vadd.f32 %v703, %v704
        %v706 = vsel %vm551, %v482, 0.0
        %v707 = vrot.slane %v706, 4
        %v708 = vadd.f32 %v706, %v707
        %v709 = vrot.slane %v708, 2
        %v710 = vadd.f32 %v708, %v709
        %v711 = vrot.slane %v710, 1
        %v712 = vadd.f32 %v710, %v711
        %v713 = vsel %vm551, %v484, 0.0
        %v714 = vrot.slane %v713, 4
        %v715 = vadd.f32 %v713, %v714
        %v716 = vrot.slane %v715, 2
        %v717 = vadd.f32 %v715, %v716
        %v718 = vrot.slane %v717, 1
        %v719 = vadd.f32 %v717, %v718
        %v720 = vsel %vm551, %v492, 0.0
        %v721 = vrot.slane %v720, 4
        %v722 = vadd.f32 %v720, %v721
        %v723 = vrot.slane %v722, 2
        %v724 = vadd.f32 %v722, %v723
        %v725 = vrot.slane %v724, 1
        %v726 = vadd.f32 %v724, %v725
        %v727 = vsel %vm551, %v500, 0.0
        %v728 = vrot.slane %v727, 4
        %v729 = vadd.f32 %v727, %v728
        %v730 = vrot.slane %v729, 2
        %v731 = vadd.f32 %v729, %v730
        %v732 = vrot.slane %v731, 1
        %v733 = vadd.f32 %v731, %v732
        %v734 = vsel %vm551, %v499, 0.0
        %v735 = vrot.slane %v734, 4
        %v736 = vadd.f32 %v734, %v735
        %v737 = vrot.slane %v736, 2
        %v738 = vadd.f32 %v736, %v737
        %v739 = vrot.slane %v738, 1
        %v740 = vadd.f32 %v738, %v739
        %v741 = vsel %vm551, %v501, 0.0
        %v742 = vrot.slane %v741, 4
        %v743 = vadd.f32 %v741, %v742
        %v744 = vrot.slane %v743, 2
        %v745 = vadd.f32 %v743, %v744
        %v746 = vrot.slane %v745, 1
        %v747 = vadd.f32 %v745, %v746
        %v748 = vsel %vm551, %v509, 0.0
        %v749 = vrot.slane %v748, 4
        %v750 = vadd.f32 %v748, %v749
        %v751 = vrot.slane %v750, 2
        %v752 = vadd.f32 %v750, %v751
        %v753 = vrot.slane %v752, 1
        %v754 = vadd.f32 %v752, %v753
        %v755 = vsel %vm551, %v517, 0.0
        %v756 = vrot.slane %v755, 4
        %v757 = vadd.f32 %v755, %v756
        %v758 = vrot.slane %v757, 2
        %v759 = vadd.f32 %v757, %v758
        %v760 = vrot.slane %v759, 1
        %v761 = vadd.f32 %v759, %v760
        %v762 = vsel %vm551, %v516, 0.0
        %v763 = vrot.slane %v762, 4
        %v764 = vadd.f32 %v762, %v763
        %v765 = vrot.slane %v764, 2
        %v766 = vadd.f32 %v764, %v765
        %v767 = vrot.slane %v766, 1
        %v768 = vadd.f32 %v766, %v767
        %v769 = vsel %vm551, %v518, 0.0
        %v770 = vrot.slane %v769, 4
        %v771 = vadd.f32 %v769, %v770
        %v772 = vrot.slane %v771, 2
        %v773 = vadd.f32 %v771, %v772
        %v774 = vrot.slane %v773, 1
        %v775 = vadd.f32 %v773, %v774
        %v776 = vmul.f32 %v558, 0.5
        %v777 = vmul.f32 %v565, 0.5
        %v778 = vmul.f32 %v572, 0.5
        %v779 = vmul.f32 %v579, 0.5
        %v780 = vmul.f32 %v586, 0.5
        %v781 = vmul.f32 %v593, 0.5
        %v782 = vmul.f32 %v600, 0.5
        %v783 = vmul.f32 %v607, 0.5
        %v784 = vmul.f32 %v614, 0.5
        %v785 = vmul.f32 %v621, 0.5
        %v786 = vmul.f32 %v628, 0.5
        %v787 = vmul.f32 %v635, 0.5
        %v788 = vmul.f32 %v642, 0.5
        %v789 = vmul.f32 %v649, 0.5
        %v790 = vmul.f32 %v656, 0.5
        %v791 = vmul.f32 %v663, 0.5
        %v792 = vmul.f32 %v670, 0.5
        %v793 = vmul.f32 %v677, 0.5
        %v794 = vmul.f32 %v684, 0.5
        %v795 = vmul.f32 %v691, 0.5
        %v796 = vmul.f32 %v698, 0.5
        %v797 = vmul.f32 %v705, 0.5
        %v798 = vmul.f32 %v712, 0.5
        %v799 = vmul.f32 %v719, 0.5
        %v800 = vmul.f32 %v726, 0.5
        %v801 = vmul.f32 %v733, 0.5
        %v802 = vmul.f32 %v740, 0.5
        %v803 = vmul.f32 %v747, 0.5
        %v804 = vmul.f32 %v754, 0.5
        %v805 = vmul.f32 %v761, 0.5
        %v806 = vmul.f32 %v768, 0.5
        %v807 = vmul.f32 %v775, 0.5
        %vm840 = vcmask 1041409
        %v841 = vsel %vm840, %v777, %v776
        %vm842 = vcmask 1042434
        %v843 = vsel %vm842, %v778, %v841
        %vm844 = vcmask 1043459
        %v845 = vsel %vm844, %v779, %v843
        %vm846 = vcmask 1044484
        %v847 = vsel %vm846, %v780, %v845
        %vm848 = vcmask 1045509
        %v849 = vsel %vm848, %v781, %v847
        %vm850 = vcmask 1046534
        %v851 = vsel %vm850, %v782, %v849
        %vm852 = vcmask 1047559
        %v853 = vsel %vm852, %v783, %v851
        %v854 = vsel %vm840, %v785, %v784
        %v855 = vsel %vm842, %v786, %v854
        %v856 = vsel %vm844, %v787, %v855
        %v857 = vsel %vm846, %v788, %v856
        %v858 = vsel %vm848, %v789, %v857
        %v859 = vsel %vm850, %v790, %v858
        %v860 = vsel %vm852, %v791, %v859
        %v861 = vsel %vm840, %v793, %v792
        %v862 = vsel %vm842, %v794, %v861
        %v863 = vsel %vm844, %v795, %v862
        %v864 = vsel %vm846, %v796, %v863
        %v865 = vsel %vm848, %v797, %v864
        %v866 = vsel %vm850, %v798, %v865
        %v867 = vsel %vm852, %v799, %v866
        %v868 = vsel %vm840, %v801, %v800
        %v869 = vsel %vm842, %v802, %v868
        %v870 = vsel %vm844, %v803, %v869
        %v871 = vsel %vm846, %v804, %v870
        %v872 = vsel %vm848, %v805, %v871
        %v873 = vsel %vm850, %v806, %v872
        %v874 = vsel %vm852, %v807, %v873
        %v879 = vcombine.low %v853, %v867
        %v880 = vcombine.high %v853, %v867
        %v882 = vunpack.c.l.s4 1983009808
        %v883 = vunpack.c.0.s8 %v882
        %v884 = vlaneseq
        %v885 = vshrl.u32 %v884, 7
        %v886 = vsub.s32 %v883, %v885
        %v887 = vrot.slane %v879, %v886
        %v889 = vunpack.c.l.s4 1983009808
        %v890 = vunpack.c.0.s8 %v889
        %v891 = vlaneseq
        %v892 = vshrl.u32 %v891, 7
        %v893 = vsub.s32 %v890, %v892
        %v894 = vrot.slane %v880, %v893
        %v895 = vcombine.low %v860, %v874
        %v896 = vcombine.high %v860, %v874
        %v898 = vunpack.c.l.s4 1983009808
        %v899 = vunpack.c.0.s8 %v898
        %v900 = vlaneseq
        %v901 = vshrl.u32 %v900, 7
        %v902 = vsub.s32 %v899, %v901
        %v903 = vrot.slane %v895, %v902
        %v905 = vunpack.c.l.s4 1983009808
        %v906 = vunpack.c.0.s8 %v905
        %v907 = vlaneseq
        %v908 = vshrl.u32 %v907, 7
        %v909 = vsub.s32 %v906, %v908
        %v910 = vrot.slane %v896, %v909
        %v911 = vcombine.low %v887, %v903
        %v912 = vcombine.high %v887, %v903
        %v914 = vunpack.c.l.s4 1934713408
        %v915 = vunpack.c.0.s8 %v914
        %v916 = vlaneseq
        %v917 = vshrl.u32 %v916, 7
        %v918 = vsub.s32 %v915, %v917
        %v919 = vrot.slane %v911, %v918
        %v921 = vunpack.c.l.s4 1934713408
        %v922 = vunpack.c.0.s8 %v921
        %v923 = vlaneseq
        %v924 = vshrl.u32 %v923, 7
        %v925 = vsub.s32 %v922, %v924
        %v926 = vrot.slane %v912, %v925
        %v927 = vcombine.low %v894, %v910
        %v928 = vcombine.high %v894, %v910
        %v930 = vunpack.c.l.s4 1934713408
        %v931 = vunpack.c.0.s8 %v930
        %v932 = vlaneseq
        %v933 = vshrl.u32 %v932, 7
        %v934 = vsub.s32 %v931, %v933
        %v935 = vrot.slane %v927, %v934
        %v937 = vunpack.c.l.s4 1934713408
        %v938 = vunpack.c.0.s8 %v937
        %v939 = vlaneseq
        %v940 = vshrl.u32 %v939, 7
        %v941 = vsub.s32 %v938, %v940
        %v942 = vrot.slane %v928, %v941
        %v943 = vcombine.high %v919, 0.0
        %v944 = vcombine.high %v926, 0.0
        %v945 = vcombine.high %v935, 0.0
        %v946 = vcombine.high %v942, 0.0
        %948 = vrot.lane.b32.xlu0 %v943, 8
        %v949 = vpop.permute.xlu0 %948
        %952 = vrot.lane.b32.xlu0 %v926, 16
        %v953 = vpop.permute.xlu0 %952
        %956 = vrot.lane.b32.xlu0 %v944, 24
        %v957 = vpop.permute.xlu0 %956
        %960 = vrot.lane.b32.xlu0 %v935, 32
        %v961 = vpop.permute.xlu0 %960
        %964 = vrot.lane.b32.xlu0 %v945, 40
        %v965 = vpop.permute.xlu0 %964
        %968 = vrot.lane.b32.xlu0 %v942, 48
        %v969 = vpop.permute.xlu0 %968
        %972 = vrot.lane.b32.xlu0 %v946, 56
        %v973 = vpop.permute.xlu0 %972
        %vm975 = vcmask 64512
        %v976 = vsel %vm975, %v919, %v949
        %v977 = vsel %vm245, %v976, %v953
        %vm978 = vcmask 195584
        %v979 = vsel %vm978, %v977, %v957
        %vm980 = vcmask 261120
        %v981 = vsel %vm980, %v979, %v961
        %vm982 = vcmask 326656
        %v983 = vsel %vm982, %v981, %v965
        %vm984 = vcmask 392192
        %v985 = vsel %vm984, %v983, %v969
        %vm986 = vcmask 457728
        %v987 = vsel %vm986, %v985, %v973
        %v988 = vld [vmem:[%s1] sm:$0xff]
        %v989 = vld [vmem:[%s2] sm:$0xff]
        %991 = vset.pattern.permute.xlu0 0
        %992 = vperm.xlu0 %991, %v989
        %v993 = vpop.permute.xlu0 %992
        %vm995 = vcmask 31744
        %v997 = vsel %vm995, %v988, 0
        %vm999 = vcmask 1043456
        %v1001 = vsel %vm999, %v987, 0
        %1003 = vmatprep.subr.mxu0 0.0
        %1004 = vmatpush1.msra.mxu0 %v1001
        %1005 = vmatprep.subr.mxu0 0.0
        %1006 = vmatpush1.msra.mxu0 0.0
        %1007 = vmatprep.subr.mxu0 0.0
        %1008 = vmatpush1.msra.mxu0 0.0
        %1009 = vmatprep.subr.mxu0 0.0
        %1010 = vmatpush1.msra.mxu0 0.0
        %1011 = vmatprep.subr.mxu0 0.0
        %1012 = vmatpush1.msra.mxu0 0.0
        %1013 = vmatprep.subr.mxu0 0.0
        %1014 = vmatpush1.msra.mxu0 0.0
        %1015 = vmatprep.subr.mxu0 0.0
        %1016 = vmatpush1.msra.mxu0 0.0
        %1017 = vmatprep.subr.mxu0 0.0
        %1018 = vmatpush1.msra.mxu0 0.0
        %1019 = vmatprep.subr.mxu0 0.0
        %1020 = vmatpush1.msra.mxu0 0.0
        %1021 = vmatprep.subr.mxu0 0.0
        %1022 = vmatpush1.msra.mxu0 0.0
        %1023 = vmatprep.subr.mxu0 0.0
        %1024 = vmatpush1.msra.mxu0 0.0
        %1025 = vmatprep.subr.mxu0 0.0
        %1026 = vmatpush1.msra.mxu0 0.0
        %1027 = vmatprep.subr.mxu0 0.0
        %1028 = vmatpush1.msra.mxu0 0.0
        %1029 = vmatprep.subr.mxu0 0.0
        %1030 = vmatpush1.msra.mxu0 0.0
        %1031 = vmatprep.subr.mxu0 0.0
        %1032 = vmatpush1.msra.mxu0 0.0
        %1033 = vmatprep.subr.mxu0 0.0
        %1034 = vmatpush1.msra.mxu0 0.0
        %1035 = vmatprep.subr.mxu0 0.0
        %1036 = vmatpush1.msra.mxu0 0.0
        %1037 = vmatprep.subr.mxu0 0.0
        %1038 = vmatpush1.msra.mxu0 0.0
        %1039 = vmatprep.subr.mxu0 0.0
        %1040 = vmatpush1.msra.mxu0 0.0
        %1041 = vmatprep.subr.mxu0 0.0
        %1042 = vmatpush1.msra.mxu0 0.0
        %1043 = vmatprep.subr.mxu0 0.0
        %1044 = vmatpush1.msra.mxu0 0.0
        %1045 = vmatprep.subr.mxu0 0.0
        %1046 = vmatpush1.msra.mxu0 0.0
        %1047 = vmatprep.subr.mxu0 0.0
        %1048 = vmatpush1.msra.mxu0 0.0
        %1049 = vmatprep.subr.mxu0 0.0
        %1050 = vmatpush1.msra.mxu0 0.0
        %1051 = vmatprep.subr.mxu0 0.0
        %1052 = vmatpush1.msra.mxu0 0.0
        %1053 = vmatprep.subr.mxu0 0.0
        %1054 = vmatpush1.msra.mxu0 0.0
        %1055 = vmatprep.subr.mxu0 0.0
        %1056 = vmatpush1.msra.mxu0 0.0
        %1057 = vmatprep.subr.mxu0 0.0
        %1058 = vmatpush1.msra.mxu0 0.0
        %1059 = vmatprep.subr.mxu0 0.0
        %1060 = vmatpush1.msra.mxu0 0.0
        %1061 = vmatprep.subr.mxu0 0.0
        %1062 = vmatpush1.msra.mxu0 0.0
        %1063 = vmatprep.subr.mxu0 0.0
        %1064 = vmatpush1.msra.mxu0 0.0
        %1065 = vmatprep.subr.mxu0 0.0
        %1066 = vmatpush1.msra.mxu0 0.0
        %1067 = vmatprep.mubr.f32.mxu0 0.0
        %1068 = vmatmul.mubr.f32.gmra.mrb[0].mxu0 %v997
        %v1069 = vpop.f32.mrb[0].mxu0
        %v1070 = vadd.f32 %v993, %v1069
        %v1071 = vpop.f32.mrb[0].mxu0
        %1072 = vdwg.mxu0
        %vm1073 = vcmask 523264
        %1074 = vst.msk [vmem:[%s233] sm:$0xff] %vm1073, %v1070
        %s1075 = sand.u32 %s134, 1
        %s1076 = scalar_lea.sflag [#allocation4], %s1075
        %s1077 = sand.u32 %s134, 1
        %s1078 = smul.addr %s1077, 8
        %s1079 = scalar_lea.vmem [#allocation5], %s1078
        // Predicated region
        $region41: #{tpu_custom_call.1} parent=35 // pred_check
          %p1080 = pneg %p144
        $region42: #{tpu_custom_call.1} parent=35 // pred_check_branch
          %1082 = sbr.rel (%p1080) target = $region44
        $region43: #{tpu_custom_call.1} parent=35 // pred_region
          %s1084 = ssub.s32 128, 128
          %1085 = vsyncadd %s1076, %s1084
          %s1086 = sadd.s32 %s26, %s25
          %s1087 = smul.addr %s1086, 128
          %s1088 = scalar_lea.hbm %s4, %s1087
          %s1090 = sshll.u32 %s1079, 4
          %s1091 = int_to_ptr.vmem [resolvable:$true] %s1090
          %1093 = dma.vmem_to_hbm [thread:$0]  %s1091, 128, %s1088, %s1076
        $region44: #{tpu_custom_call.1} parent=35 // pred_fallthru
          _
      $region36: #{tpu_custom_call.1} parent=5 // pred_fallthru
        _
      %p1094 = scmp.le.s32.totalorder 2, %s16
      // Predicated region
      $region45: #{tpu_custom_call.1} parent=5 // pred_check
        %p1095 = pneg %p1094
      $region46: #{tpu_custom_call.1} parent=5 // pred_check_branch
        %1097 = sbr.rel (%p1095) target = $region48
      $region47: #{tpu_custom_call.1} parent=5 // pred_region
        %s1098 = ssub.s32 %s16, 2
        // Predicated region
        $region49: #{tpu_custom_call.1} parent=47 // pred_check
          %p1099 = pneg %p150
        $region50: #{tpu_custom_call.1} parent=47 // pred_check_branch
          %1101 = sbr.rel (%p1099) target = $region52
        $region51: #{tpu_custom_call.1} parent=47 // pred_region
          %s1102 = sand.u32 %s135, 1
          %s1103 = scalar_lea.sflag [#allocation4], %s1102
          %s1104 = sand.u32 %s135, 1
          %s1105 = smul.addr %s1104, 8
          %s1106 = scalar_lea.vmem [#allocation5], %s1105
          %1107 = dma.done %s1103, 128
        $region52: #{tpu_custom_call.1} parent=47 // pred_fallthru
          _
      $region48: #{tpu_custom_call.1} parent=5 // pred_fallthru
        _
    $region6: #{tpu_custom_call.1} parent=1 // loop_footer
      %s20 = sadd.s32 1, %s16
    $region7: #{tpu_custom_call.1} parent=1 // loop_footer_branch
      %15 = sbr.rel target = $region3
    $region8: #{tpu_custom_call.1} parent=1 // loop_exit
      _
    %1108 = vsyncpa [#allocation3], 1
    %s1109 = scalar_lea.sflag [#allocation3], 1
    %1110 = vsyncpa %s1109, 1
    %1111 = vsyncpa [#allocation4], 1
    %s1112 = scalar_lea.sflag [#allocation4], 1
    %1113 = vsyncpa %s1112, 1

</llo_original>
